<compile_context>
chip_gen: v6e
topology: v6e:2x2x1
jax: 0.10.0
libtpu: 0.0.40
codegen_flags: <defaults>
</compile_context>

<pallas_src>
import functools

import jax
import jax.numpy as jnp
from jax.experimental import pallas as pl
from jax.experimental.pallas import tpu as pltpu


# ----------------------------- fused single-pass -----------------------------

def _se_fused_kernel(x_ref, w1t_ref, b1_ref, w2t_ref, b2_ref, out_ref):
    # x_ref/out_ref: (b_tile, C, L); w1t: (C, H); b1: (1, H); w2t: (H, C); b2: (1, C)
    xf = x_ref[...].astype(jnp.float32)
    inv_len = 1.0 / x_ref.shape[-1]                       # static
    pooled = jnp.sum(xf, axis=-1) * inv_len               # (b_tile, C)

    h = jnp.dot(pooled, w1t_ref[...], preferred_element_type=jnp.float32) + b1_ref[...]
    h = jnp.maximum(h, 0.0)                               # (b_tile, H)
    s = jnp.dot(h, w2t_ref[...], preferred_element_type=jnp.float32) + b2_ref[...]
    s = jax.nn.sigmoid(s)                                 # (b_tile, C)

    out_ref[...] = (xf * s[:, :, None]).astype(out_ref.dtype)


def _se_fused(x, w1t, b1_2d, w2t, b2_2d, b_tile, vmem_limit_bytes):
    B, C, L = x.shape
    H = w1t.shape[1]
    return pl.pallas_call(
        _se_fused_kernel,
        out_shape=jax.ShapeDtypeStruct((B, C, L), x.dtype),
        grid=(pl.cdiv(B, b_tile),),
        in_specs=[
            pl.BlockSpec((b_tile, C, L), lambda b: (b, 0, 0)),   # x
            pl.BlockSpec((C, H), lambda b: (0, 0)),              # W1^T
            pl.BlockSpec((1, H), lambda b: (0, 0)),              # b1
            pl.BlockSpec((H, C), lambda b: (0, 0)),              # W2^T
            pl.BlockSpec((1, C), lambda b: (0, 0)),              # b2
        ],
        out_specs=pl.BlockSpec((b_tile, C, L), lambda b: (b, 0, 0)),
        compiler_params=pltpu.CompilerParams(
            dimension_semantics=("parallel",),                   # shard B tiles across TCs
            vmem_limit_bytes=vmem_limit_bytes,
        ),
    )(x, w1t, b1_2d, w2t, b2_2d)


# ------------------------------ two-pass fallback -----------------------------

def _pool_sum_kernel(x_ref, pooled_ref, *, l_tile, true_len, needs_mask):
    # x_ref: (1, C, l_tile); pooled_ref: (1, 1, C) f32, resident across the L axis.
    l = pl.program_id(1)

    @pl.when(l == 0)
    def _():
        pooled_ref[...] = jnp.zeros_like(pooled_ref)

    xf = x_ref[...].astype(jnp.float32)
    if needs_mask:  # static: only emitted when l_tile does not divide L
        pos = l * l_tile + jax.lax.broadcasted_iota(jnp.int32, xf.shape, 2)
        xf = jnp.where(pos < true_len, xf, 0.0)
    pooled_ref[...] += jnp.sum(xf, axis=-1)[:, None, :]


def _scale_kernel(x_ref, s_ref, out_ref):
    # x_ref/out_ref: (1, C, l_tile); s_ref: (1, C, 1) f32
    out_ref[...] = (x_ref[...].astype(jnp.float32) * s_ref[...]).astype(out_ref.dtype)


def _se_two_pass(x, w1, b1, w2, b2, l_tile, vmem_limit_bytes):
    B, C, L = x.shape
    n_l = pl.cdiv(L, l_tile)
    needs_mask = (L % l_tile) != 0

    # Pass 1: per-(B, C) sum over L (accumulator pattern, L axis last / arbitrary).
    pooled_sum = pl.pallas_call(
        functools.partial(_pool_sum_kernel, l_tile=l_tile, true_len=L,
                          needs_mask=needs_mask),
        out_shape=jax.ShapeDtypeStruct((B, 1, C), jnp.float32),
        grid=(B, n_l),
        in_specs=[pl.BlockSpec((1, C, l_tile), lambda b, l: (b, 0, l))],
        out_specs=pl.BlockSpec((1, 1, C), lambda b, l: (b, 0, 0)),
        compiler_params=pltpu.CompilerParams(
            dimension_semantics=("parallel", "arbitrary"),
            vmem_limit_bytes=vmem_limit_bytes,
        ),
    )(x)

    # Tiny FC1 -> ReLU -> FC2 -> sigmoid gate: negligible FLOPs, computed once in XLA.
    pooled = pooled_sum[:, 0, :] * (1.0 / L)                      # (B, C)
    h = jnp.maximum(pooled @ w1.T.astype(jnp.float32) + b1, 0.0)
    s = jax.nn.sigmoid(h @ w2.T.astype(jnp.float32) + b2).astype(jnp.float32)
    s3 = s[:, :, None]                                            # (B, C, 1)

    # Pass 2: lane-dense tiled broadcast-and-scale.
    return pl.pallas_call(
        _scale_kernel,
        out_shape=jax.ShapeDtypeStruct((B, C, L), x.dtype),
        grid=(B, n_l),
        in_specs=[
            pl.BlockSpec((1, C, l_tile), lambda b, l: (b, 0, l)),
            pl.BlockSpec((1, C, 1), lambda b, l: (b, 0, 0)),
        ],
        out_specs=pl.BlockSpec((1, C, l_tile), lambda b, l: (b, 0, l)),
        compiler_params=pltpu.CompilerParams(
            dimension_semantics=("parallel", "parallel"),
            vmem_limit_bytes=vmem_limit_bytes,
        ),
    )(x, s3)


# ---------------------------------- wrapper -----------------------------------

def _pick_l_tile(L, cap):
    # Largest multiple of 128 <= cap that evenly divides L (lane-dense, no masked
    # tail); otherwise just cap (pool kernel masks the padded tail).
    t = (cap // 128) * 128
    while t >= 128:
        if L % t == 0:
            return t
        t -= 128
    return max(128, (cap // 128) * 128)


def squeeze_excite(x, w1, b1, w2, b2, *, b_tile=None, l_tile=None,
                   vmem_budget_bytes=24 * 1024 * 1024):
    """x: (B, C, L); w1: (H, C); b1: (H,); w2: (C, H); b2: (C,) (PyTorch Linear layout)."""
    B, C, L = x.shape
    H = w1.shape[0]
    itemsize = jnp.dtype(x.dtype).itemsize
    row_bytes = C * L * itemsize
    inflight_per_row = 4 * row_bytes      # (x tile + out tile) x double buffering

    vmem_limit_bytes = int(max(32 << 20, min(vmem_budget_bytes + (4 << 20), 128 << 20)))

    two_pass = (l_tile is not None) or (b_tile is None and inflight_per_row > vmem_budget_bytes)

    if not two_pass:
        if b_tile is None:
            b_tile = int(max(1, min(B, vmem_budget_bytes // inflight_per_row)))
        # Pre-transpose tiny weights / reshape biases outside the kernel (cheap glue).
        w1t = w1.T.astype(jnp.float32)            # (C, H)
        w2t = w2.T.astype(jnp.float32)            # (H, C)
        b1_2d = b1.reshape(1, H).astype(jnp.float32)
        b2_2d = b2.reshape(1, C).astype(jnp.float32)
        return _se_fused(x, w1t, b1_2d, w2t, b2_2d, int(b_tile), vmem_limit_bytes)

    if l_tile is None:
        cap = max(128, (vmem_budget_bytes // (4 * C * itemsize)) // 128 * 128)
        l_tile = _pick_l_tile(L, cap)
    return _se_two_pass(x, w1, b1, w2, b2, int(l_tile), vmem_limit_bytes)


# ----------------------------------- testing ----------------------------------

def _reference(x, w1, b1, w2, b2):
    pooled = jnp.mean(x, axis=-1)
    h = jnp.maximum(pooled @ w1.T + b1, 0.0)
    s = jax.nn.sigmoid(h @ w2.T + b2)
    return x * s[:, :, None]


def _make_inputs(key, B, C, H, L):
    kx, kw1, kb1, kw2, kb2 = jax.random.split(key, 5)
    x = jax.random.normal(kx, (B, C, L), dtype=jnp.float32)
    lim1 = 1.0 / float(jnp.sqrt(C))
    lim2 = 1.0 / float(jnp.sqrt(H))
    w1 = jax.random.uniform(kw1, (H, C), minval=-lim1, maxval=lim1, dtype=jnp.float32)
    b1 = jax.random.uniform(kb1, (H,), minval=-lim1, maxval=lim1, dtype=jnp.float32)
    w2 = jax.random.uniform(kw2, (C, H), minval=-lim2, maxval=lim2, dtype=jnp.float32)
    b2 = jax.random.uniform(kb2, (C,), minval=-lim2, maxval=lim2, dtype=jnp.float32)
    return x, w1, b1, w2, b2


if __name__ == "__main__":
    key = jax.random.PRNGKey(0)
    k1, k2, k3 = jax.random.split(key, 3)

    # 1) Toy shapes implied by the module (fused single-pass path).
    x, w1, b1, w2, b2 = _make_inputs(k1, B=2, C=16, H=16 // 4, L=32)
    out = squeeze_excite(x, w1, b1, w2, b2)
    jax.block_until_ready(out)
    ref = _reference(x, w1, b1, w2, b2)
    assert out.shape == x.shape
    assert jnp.allclose(out, ref, atol=1e-4, rtol=1e-4), "fused path mismatch"

    # 2) Fused path with a real multi-step B grid (b_tile=2 -> grid=(4,)).
    x, w1, b1, w2, b2 = _make_inputs(k2, B=8, C=32, H=8, L=512)
    out = squeeze_excite(x, w1, b1, w2, b2, b_tile=2)
    jax.block_until_ready(out)
    ref = _reference(x, w1, b1, w2, b2)
    assert jnp.allclose(out, ref, atol=1e-4, rtol=1e-4), "tiled fused path mismatch"

    # 3) Two-pass fallback (L-tiled accumulated pool + lane-dense scale), l_tile=128.
    x, w1, b1, w2, b2 = _make_inputs(k3, B=4, C=16, H=4, L=384)
    out = squeeze_excite(x, w1, b1, w2, b2, l_tile=128)
    jax.block_until_ready(out)
    ref = _reference(x, w1, b1, w2, b2)
    assert jnp.allclose(out, ref, atol=1e-4, rtol=1e-4), "two-pass path mismatch"

    print("KERNEL_OK")
</pallas_src>

<mosaic_0001>
module attributes {stable_mosaic.version = 11 : i64} {
  func.func @_se_fused_kernel(%arg0: i32, %arg1: memref<2x16x32xf32, #tpu.memory_space<vmem>>, %arg2: memref<16x4xf32, #tpu.memory_space<vmem>>, %arg3: memref<1x4xf32, #tpu.memory_space<vmem>>, %arg4: memref<4x16xf32, #tpu.memory_space<vmem>>, %arg5: memref<1x16xf32, #tpu.memory_space<vmem>>, %arg6: memref<2x16x32xf32, #tpu.memory_space<vmem>>) attributes {dimension_semantics = [#tpu.dimension_semantics<parallel>], iteration_bounds = array<i64: 1>, scalar_prefetch = 0 : i64, scratch_operands = 0 : i64, tpu.core_type = #tpu.core_type<tc>, window_params = [{transform_indices = @transform_0, window_bounds = array<i64: 2, 16, 32>}, {pipeline_mode = #tpu.pipeline_mode<synchronous>, transform_indices = @transform_1, window_bounds = array<i64: 16, 4>}, {pipeline_mode = #tpu.pipeline_mode<synchronous>, transform_indices = @transform_2, window_bounds = array<i64: 1, 4>}, {pipeline_mode = #tpu.pipeline_mode<synchronous>, transform_indices = @transform_3, window_bounds = array<i64: 4, 16>}, {pipeline_mode = #tpu.pipeline_mode<synchronous>, transform_indices = @transform_4, window_bounds = array<i64: 1, 16>}, {transform_indices = @transform_5, window_bounds = array<i64: 2, 16, 32>}]} {
    %c0 = arith.constant 0 : index
    %c0_0 = arith.constant 0 : index
    %c0_1 = arith.constant 0 : index
    %0 = vector.load %arg1[%c0, %c0_0, %c0_1] : memref<2x16x32xf32, #tpu.memory_space<vmem>>, vector<2x16x32xf32>
    %cst = arith.constant dense<0.000000e+00> : vector<2x16xf32>
    %1 = vector.multi_reduction <add>, %0, %cst [2] : vector<2x16x32xf32> to vector<2x16xf32>
    %cst_2 = arith.constant 3.125000e-02 : f32
    %2 = vector.broadcast %cst_2 : f32 to vector<2x16xf32>
    %3 = arith.mulf %1, %2 : vector<2x16xf32>
    %c0_3 = arith.constant 0 : index
    %c0_4 = arith.constant 0 : index
    %4 = vector.load %arg2[%c0_3, %c0_4] : memref<16x4xf32, #tpu.memory_space<vmem>>, vector<16x4xf32>
    %cst_5 = arith.constant dense<0.000000e+00> : vector<2x4xf32>
    %5 = tpu.matmul %3, %4, %cst_5 {dimension_numbers = #tpu.dot_dimension_numbers<[1], [0], [0], [1], [0, 0, 1, 1], [], []>} : vector<2x16xf32>, vector<16x4xf32>, vector<2x4xf32> -> vector<2x4xf32>
    %c0_6 = arith.constant 0 : index
    %c0_7 = arith.constant 0 : index
    %6 = vector.load %arg3[%c0_6, %c0_7] : memref<1x4xf32, #tpu.memory_space<vmem>>, vector<1x4xf32>
    %7 = vector.broadcast %6 : vector<1x4xf32> to vector<2x4xf32>
    %8 = arith.addf %5, %7 : vector<2x4xf32>
    %cst_8 = arith.constant 0.000000e+00 : f32
    %9 = vector.broadcast %cst_8 : f32 to vector<2x4xf32>
    %10 = arith.maximumf %8, %9 : vector<2x4xf32>
    %c0_9 = arith.constant 0 : index
    %c0_10 = arith.constant 0 : index
    %11 = vector.load %arg4[%c0_9, %c0_10] : memref<4x16xf32, #tpu.memory_space<vmem>>, vector<4x16xf32>
    %cst_11 = arith.constant dense<0.000000e+00> : vector<2x16xf32>
    %12 = tpu.matmul %10, %11, %cst_11 {dimension_numbers = #tpu.dot_dimension_numbers<[1], [0], [0], [1], [0, 0, 1, 1], [], []>} : vector<2x4xf32>, vector<4x16xf32>, vector<2x16xf32> -> vector<2x16xf32>
    %c0_12 = arith.constant 0 : index
    %c0_13 = arith.constant 0 : index
    %13 = vector.load %arg5[%c0_12, %c0_13] : memref<1x16xf32, #tpu.memory_space<vmem>>, vector<1x16xf32>
    %14 = vector.broadcast %13 : vector<1x16xf32> to vector<2x16xf32>
    %15 = arith.addf %12, %14 : vector<2x16xf32>
    %16 = arith.negf %15 : vector<2x16xf32>
    %17 = math.exp %16 : vector<2x16xf32>
    %cst_14 = arith.constant 1.000000e+00 : f32
    %18 = vector.broadcast %cst_14 : f32 to vector<2x16xf32>
    %19 = arith.addf %18, %17 : vector<2x16xf32>
    %20 = arith.divf %18, %19 : vector<2x16xf32>
    %21 = vector.shape_cast %20 : vector<2x16xf32> to vector<2x16x1xf32>
    %22 = vector.broadcast %21 : vector<2x16x1xf32> to vector<2x16x32xf32>
    %23 = arith.mulf %0, %22 : vector<2x16x32xf32>
    %c0_15 = arith.constant 0 : index
    %c0_16 = arith.constant 0 : index
    %c0_17 = arith.constant 0 : index
    %24 = vector.load %arg6[%c0_15, %c0_16, %c0_17] : memref<2x16x32xf32, #tpu.memory_space<vmem>>, vector<2x16x32xf32>
    tpu.vector_store %arg6[%c0_15, %c0_16, %c0_17], %23 {strides = array<i32>} : memref<2x16x32xf32, #tpu.memory_space<vmem>>, vector<2x16x32xf32>,
    return
  }
  func.func @transform_0(%arg0: i32) -> (i32, i32, i32) {
    %c0_i32 = arith.constant 0 : i32
    %c0_i32_0 = arith.constant 0 : i32
    %c0_i32_1 = arith.constant 0 : i32
    return %arg0, %c0_i32, %c0_i32_0 : i32, i32, i32
  }
  func.func @transform_1(%arg0: i32) -> (i32, i32) {
    %c0_i32 = arith.constant 0 : i32
    %c0_i32_0 = arith.constant 0 : i32
    %c0_i32_1 = arith.constant 0 : i32
    return %c0_i32, %c0_i32_0 : i32, i32
  }
  func.func @transform_2(%arg0: i32) -> (i32, i32) {
    %c0_i32 = arith.constant 0 : i32
    %c0_i32_0 = arith.constant 0 : i32
    %c0_i32_1 = arith.constant 0 : i32
    return %c0_i32, %c0_i32_0 : i32, i32
  }
  func.func @transform_3(%arg0: i32) -> (i32, i32) {
    %c0_i32 = arith.constant 0 : i32
    %c0_i32_0 = arith.constant 0 : i32
    %c0_i32_1 = arith.constant 0 : i32
    return %c0_i32, %c0_i32_0 : i32, i32
  }
  func.func @transform_4(%arg0: i32) -> (i32, i32) {
    %c0_i32 = arith.constant 0 : i32
    %c0_i32_0 = arith.constant 0 : i32
    %c0_i32_1 = arith.constant 0 : i32
    return %c0_i32, %c0_i32_0 : i32, i32
  }
  func.func @transform_5(%arg0: i32) -> (i32, i32, i32) {
    %c0_i32 = arith.constant 0 : i32
    %c0_i32_0 = arith.constant 0 : i32
    %c0_i32_1 = arith.constant 0 : i32
    return %arg0, %c0_i32, %c0_i32_0 : i32, i32, i32
  }
}

</mosaic_0001>

<llo_original>
// kernel: tpu_custom_call.1
$region0: #{tpu_custom_call.1}
  #allocation0 [shape = 'u32[]', space=smem, size = 0x4, offset = 0x4, fixed_abs, tag = 'smem constant byte address 0x4 - core index']
  #allocation1 [shape = 'u32[144,128]{1,0:T(1,128)}', space=vmem, size = 0x12000, scoped, tag = 'internal scratch']
  %s0 = inlined_call_operand.hbm [shape: f32[2,16,32], index: 0, kind: input, shape index: {}]
  %s1 = inlined_call_operand.vmem [shape: f32[16,4], index: 1, kind: input, shape index: {}]
  %s2 = inlined_call_operand.vmem [shape: f32[1,4], index: 2, kind: input, shape index: {}]
  %s3 = inlined_call_operand.vmem [shape: f32[4,16], index: 3, kind: input, shape index: {}]
  %s4 = inlined_call_operand.vmem [shape: f32[1,16], index: 4, kind: input, shape index: {}]
  %s5 = inlined_call_operand.hbm [shape: f32[2,16,32], index: 5, kind: output, shape index: {}]
  %s6 = sld [smem:[#allocation0]]
  $region34: #{tpu_custom_call.1} parent=0
    _
  %s8 = ssub.s32 1, %s6
  %s9 = scalar_select 0, %s8, %s6
  $region1: #{tpu_custom_call.1} parent=0
    #allocation2 [shape = 'u8[16384]{0}', space=vmem, size = 0x4000, scoped, tag = 'input window, operand 0, single buffered']
    #allocation3 [shape = 's32[1]{0}', space=sflag, size = 0x4, scoped, tag = 'scoped memory for tpu_custom_call.1']
    #allocation4 [shape = 's32[1]{0}', space=sflag, size = 0x4, scoped, tag = 'scoped memory for tpu_custom_call.1']
    #allocation5 [shape = 'u8[16384]{0}', space=vmem, size = 0x4000, scoped, tag = 'output window, operand 0, single buffered']
    %10 = vsyncpa [#allocation3], 0
    %11 = vsyncpa [#allocation4], 0
    // Predicated region
    $region2: #{tpu_custom_call.1} parent=1 // pred_check
      _
    $region3: #{tpu_custom_call.1} parent=1 // pred_check_branch
      %13 = sbr.rel (0) target = $region5
    $region4: #{tpu_custom_call.1} parent=1 // pred_region
      %s15 = ssub.s32 512, 512
      %16 = vsyncadd [#allocation3], %s15
      %s17 = sshll.u32 [#allocation2], 4
      %s18 = int_to_ptr.vmem [resolvable:$true] %s17
      %23 = dma.hbm_to_vmem [thread:$0]  %s0, 512, %s18, [#allocation3], 128, 128, 8
    $region5: #{tpu_custom_call.1} parent=1 // pred_fallthru
      _
    // Predicated region
    $region6: #{tpu_custom_call.1} parent=1 // pred_check
      _
    $region7: #{tpu_custom_call.1} parent=1 // pred_check_branch
      %25 = sbr.rel (0) target = $region9
    $region8: #{tpu_custom_call.1} parent=1 // pred_region
      _
    $region9: #{tpu_custom_call.1} parent=1 // pred_fallthru
      _
    // Predicated region
    $region10: #{tpu_custom_call.1} parent=1 // pred_check
      _
    $region11: #{tpu_custom_call.1} parent=1 // pred_check_branch
      %27 = sbr.rel (0) target = $region13
    $region12: #{tpu_custom_call.1} parent=1 // pred_region
      _
    $region13: #{tpu_custom_call.1} parent=1 // pred_fallthru
      _
    // Predicated region
    $region14: #{tpu_custom_call.1} parent=1 // pred_check
      _
    $region15: #{tpu_custom_call.1} parent=1 // pred_check_branch
      %29 = sbr.rel (0) target = $region17
    $region16: #{tpu_custom_call.1} parent=1 // pred_region
      _
    $region17: #{tpu_custom_call.1} parent=1 // pred_fallthru
      _
    // Predicated region
    $region18: #{tpu_custom_call.1} parent=1 // pred_check
      _
    $region19: #{tpu_custom_call.1} parent=1 // pred_check_branch
      %31 = sbr.rel (0) target = $region21
    $region20: #{tpu_custom_call.1} parent=1 // pred_region
      _
    $region21: #{tpu_custom_call.1} parent=1 // pred_fallthru
      _
    // Predicated region
    $region22: #{tpu_custom_call.1} parent=1 // pred_check
      _
    $region23: #{tpu_custom_call.1} parent=1 // pred_check_branch
      %33 = sbr.rel (0) target = $region25
    $region24: #{tpu_custom_call.1} parent=1 // pred_region
      %34 = dma.done [#allocation3], 512
    $region25: #{tpu_custom_call.1} parent=1 // pred_fallthru
      _
    %v35 = vld [vmem:[#allocation2] sm:$0xff]
    %v36 = vld [vmem:[#allocation2 + $0x8] sm:$0xff]
    %v37 = vld [vmem:[#allocation2 + $0x10] sm:$0xff]
    %v38 = vld [vmem:[#allocation2 + $0x18] sm:$0xff]
    %vm39 = vcmask 261120
    %v40 = vsel %vm39, %v35, 0.0
    %41 = vadd.xlane.f32.xlu0 %v40
    %v42 = vpop.xlane.xlu0 %41
    %v43 = vsel %vm39, %v36, 0.0
    %44 = vadd.xlane.f32.xlu0 %v43
    %v45 = vpop.xlane.xlu0 %44
    %v46 = vsel %vm39, %v37, 0.0
    %47 = vadd.xlane.f32.xlu0 %v46
    %v48 = vpop.xlane.xlu0 %47
    %v49 = vsel %vm39, %v38, 0.0
    %50 = vadd.xlane.f32.xlu0 %v49
    %v51 = vpop.xlane.xlu0 %50
    %v52 = vmul.f32 %v42, 0.03125
    %v53 = vmul.f32 %v45, 0.03125
    %v54 = vmul.f32 %v48, 0.03125
    %v55 = vmul.f32 %v51, 0.03125
    %v56 = vld [vmem:[%s1] sm:$0xff]
    %v57 = vld [vmem:[%s1 + $0x8] sm:$0xff]
    %v58 = vld [vmem:[%s2] sm:$0x1]
    %v60 = vlaneseq
    %v61 = vshrl.u32 %v60, 7
    %v62 = vsub.s32 0, %v61
    %v63 = vrot.slane %v58, %v62
    %v69 = vlaneseq
    %v70 = vand.u32 %v69, 127
    %v71 = vlaneseq
    %v72 = vshrl.u32 %v71, 7
    %v73 = vsub.s32 %v70, %v72
    %v74 = vrot.slane %v52, %v73
    %v75 = vadd.s32 %v70, 4294967288
    %v76 = vlaneseq
    %v77 = vshrl.u32 %v76, 7
    %v78 = vsub.s32 %v75, %v77
    %v79 = vrot.slane %v53, %v78
    %vm80 = vcmask 130112
    %v81 = vsel %vm80, %v79, %v74
    %v82 = vlaneseq
    %v83 = vshrl.u32 %v82, 7
    %v84 = vsub.s32 %v70, %v83
    %v85 = vrot.slane %v54, %v84
    %v86 = vlaneseq
    %v87 = vshrl.u32 %v86, 7
    %v88 = vsub.s32 %v75, %v87
    %v89 = vrot.slane %v55, %v88
    %v90 = vsel %vm80, %v89, %v85
    %vm91 = vcmask 1041409
    %v92 = vsel %vm91, %v90, %v81
    %vm93 = vcmask 130048
    %v94 = vsel %vm93, %v92, 0
    %96 = vmatprep.subr.mxu0 0.0
    %97 = vmatpush1.msra.mxu0 0.0
    %98 = vmatprep.subr.mxu0 0.0
    %99 = vmatpush1.msra.mxu0 0.0
    %100 = vmatprep.subr.mxu0 0.0
    %101 = vmatpush1.msra.mxu0 0.0
    %102 = vmatprep.subr.mxu0 0.0
    %103 = vmatpush1.msra.mxu0 0.0
    %104 = vmatprep.subr.mxu0 0.0
    %105 = vmatpush1.msra.mxu0 0.0
    %106 = vmatprep.subr.mxu0 0.0
    %107 = vmatpush1.msra.mxu0 0.0
    %108 = vmatprep.subr.mxu0 0.0
    %109 = vmatpush1.msra.mxu0 0.0
    %110 = vmatprep.subr.mxu0 0.0
    %111 = vmatpush1.msra.mxu0 0.0
    %112 = vmatprep.subr.mxu0 0.0
    %113 = vmatpush1.msra.mxu0 0.0
    %114 = vmatprep.subr.mxu0 0.0
    %115 = vmatpush1.msra.mxu0 0.0
    %116 = vmatprep.subr.mxu0 0.0
    %117 = vmatpush1.msra.mxu0 0.0
    %118 = vmatprep.subr.mxu0 0.0
    %119 = vmatpush1.msra.mxu0 0.0
    %120 = vmatprep.subr.mxu0 0.0
    %121 = vmatpush1.msra.mxu0 0.0
    %122 = vmatprep.subr.mxu0 0.0
    %123 = vmatpush1.msra.mxu0 0.0
    %124 = vmatprep.subr.mxu0 0.0
    %125 = vmatpush1.msra.mxu0 %v57
    %126 = vmatprep.subr.mxu0 0.0
    %127 = vmatpush1.msra.mxu0 %v56
    %128 = vmatprep.subr.mxu0 0.0
    %129 = vmatpush2.msra.mxu0 0.0
    %130 = vmatprep.subr.mxu0 0.0
    %131 = vmatpush2.msra.mxu0 0.0
    %132 = vmatprep.subr.mxu0 0.0
    %133 = vmatpush2.msra.mxu0 0.0
    %134 = vmatprep.subr.mxu0 0.0
    %135 = vmatpush2.msra.mxu0 0.0
    %136 = vmatprep.subr.mxu0 0.0
    %137 = vmatpush2.msra.mxu0 0.0
    %138 = vmatprep.subr.mxu0 0.0
    %139 = vmatpush2.msra.mxu0 0.0
    %140 = vmatprep.subr.mxu0 0.0
    %141 = vmatpush2.msra.mxu0 0.0
    %142 = vmatprep.subr.mxu0 0.0
    %143 = vmatpush2.msra.mxu0 0.0
    %144 = vmatprep.subr.mxu0 0.0
    %145 = vmatpush2.msra.mxu0 0.0
    %146 = vmatprep.subr.mxu0 0.0
    %147 = vmatpush2.msra.mxu0 0.0
    %148 = vmatprep.subr.mxu0 0.0
    %149 = vmatpush2.msra.mxu0 0.0
    %150 = vmatprep.subr.mxu0 0.0
    %151 = vmatpush2.msra.mxu0 0.0
    %152 = vmatprep.subr.mxu0 0.0
    %153 = vmatpush2.msra.mxu0 0.0
    %154 = vmatprep.subr.mxu0 0.0
    %155 = vmatpush2.msra.mxu0 0.0
    %156 = vmatprep.subr.mxu0 0.0
    %157 = vmatpush2.msra.mxu0 0.0
    %158 = vmatprep.subr.mxu0 0.0
    %159 = vmatpush2.msra.mxu0 0.0
    %160 = vmatprep.mubr.f32.mxu0 0.0
    %161 = vmatmul.mubr.f32.gmra.mxu0 %v94
    %v162 = vpop.f32.mrf.mxu0
    %v163 = vadd.f32 %v63, %v162
    %v164 = vpop.f32.mrf.mxu0
    %165 = vdwg.mxu0
    %v166 = vmax.f32 %v163, 0.0
    %v167 = vld [vmem:[%s3] sm:$0xf]
    %v168 = vld [vmem:[%s4] sm:$0x1]
    %v170 = vlaneseq
    %v171 = vshrl.u32 %v170, 7
    %v172 = vsub.s32 0, %v171
    %v173 = vrot.slane %v168, %v172
    %vm175 = vcmask 31744
    %v177 = vsel %vm175, %v166, 0
    %vm179 = vcmask 1043456
    %v181 = vsel %vm179, %v167, 0
    %183 = vmatprep.subr.mxu0 0.0
    %184 = vmatpush1.msra.mxu0 0.0
    %185 = vmatprep.subr.mxu0 0.0
    %186 = vmatpush1.msra.mxu0 0.0
    %187 = vmatprep.subr.mxu0 0.0
    %188 = vmatpush1.msra.mxu0 0.0
    %189 = vmatprep.subr.mxu0 0.0
    %190 = vmatpush1.msra.mxu0 0.0
    %191 = vmatprep.subr.mxu0 0.0
    %192 = vmatpush1.msra.mxu0 0.0
    %193 = vmatprep.subr.mxu0 0.0
    %194 = vmatpush1.msra.mxu0 0.0
    %195 = vmatprep.subr.mxu0 0.0
    %196 = vmatpush1.msra.mxu0 0.0
    %197 = vmatprep.subr.mxu0 0.0
    %198 = vmatpush1.msra.mxu0 0.0
    %199 = vmatprep.subr.mxu0 0.0
    %200 = vmatpush1.msra.mxu0 0.0
    %201 = vmatprep.subr.mxu0 0.0
    %202 = vmatpush1.msra.mxu0 0.0
    %203 = vmatprep.subr.mxu0 0.0
    %204 = vmatpush1.msra.mxu0 0.0
    %205 = vmatprep.subr.mxu0 0.0
    %206 = vmatpush1.msra.mxu0 0.0
    %207 = vmatprep.subr.mxu0 0.0
    %208 = vmatpush1.msra.mxu0 0.0
    %209 = vmatprep.subr.mxu0 0.0
    %210 = vmatpush1.msra.mxu0 0.0
    %211 = vmatprep.subr.mxu0 0.0
    %212 = vmatpush1.msra.mxu0 0.0
    %213 = vmatprep.subr.mxu0 0.0
    %214 = vmatpush1.msra.mxu0 %v181
    %215 = vmatprep.subr.mxu0 0.0
    %216 = vmatpush2.msra.mxu0 0.0
    %217 = vmatprep.subr.mxu0 0.0
    %218 = vmatpush2.msra.mxu0 0.0
    %219 = vmatprep.subr.mxu0 0.0
    %220 = vmatpush2.msra.mxu0 0.0
    %221 = vmatprep.subr.mxu0 0.0
    %222 = vmatpush2.msra.mxu0 0.0
    %223 = vmatprep.subr.mxu0 0.0
    %224 = vmatpush2.msra.mxu0 0.0
    %225 = vmatprep.subr.mxu0 0.0
    %226 = vmatpush2.msra.mxu0 0.0
    %227 = vmatprep.subr.mxu0 0.0
    %228 = vmatpush2.msra.mxu0 0.0
    %229 = vmatprep.subr.mxu0 0.0
    %230 = vmatpush2.msra.mxu0 0.0
    %231 = vmatprep.subr.mxu0 0.0
    %232 = vmatpush2.msra.mxu0 0.0
    %233 = vmatprep.subr.mxu0 0.0
    %234 = vmatpush2.msra.mxu0 0.0
    %235 = vmatprep.subr.mxu0 0.0
    %236 = vmatpush2.msra.mxu0 0.0
    %237 = vmatprep.subr.mxu0 0.0
    %238 = vmatpush2.msra.mxu0 0.0
    %239 = vmatprep.subr.mxu0 0.0
    %240 = vmatpush2.msra.mxu0 0.0
    %241 = vmatprep.subr.mxu0 0.0
    %242 = vmatpush2.msra.mxu0 0.0
    %243 = vmatprep.subr.mxu0 0.0
    %244 = vmatpush2.msra.mxu0 0.0
    %245 = vmatprep.subr.mxu0 0.0
    %246 = vmatpush2.msra.mxu0 0.0
    %247 = vmatprep.mubr.f32.mxu0 0.0
    %248 = vmatmul.mubr.f32.gmra.mxu0 %v177
    %v249 = vpop.f32.mrf.mxu0
    %v250 = vadd.f32 %v173, %v249
    %v251 = vpop.f32.mrf.mxu0
    %252 = vdwg.mxu0
    %v253 = vxor.u32 %v250, 2147483648
    %v254 = vmul.f32 %v253, 1.442695
    %v255 = vpow.pop %v254
    %v256 = vadd.f32 %v255, 1.0
    %v257 = vrcp.pop %v256
    %v258 = vmul.f32 1.0, %v257
    %v259 = vlaneseq
    %v260 = vshrl.u32 %v259, 7
    %v261 = vsub.s32 0, %v260
    %v262 = vrot.slane %v258, %v261
    %264 = vbcast.lane.b32.xlu0 %v262, 256
    %v265 = vpop.permute.xlu0 %264
    %s267 = sor.u32 256, 8
    %268 = vbcast.lane.b32.xlu0 %v262, %s267
    %v269 = vpop.permute.xlu0 %268
    %v270 = vlaneseq
    %v271 = vshrl.u32 %v270, 7
    %v272 = vsub.s32 1, %v271
    %v273 = vrot.slane %v258, %v272
    %275 = vbcast.lane.b32.xlu0 %v273, 256
    %v276 = vpop.permute.xlu0 %275
    %s278 = sor.u32 256, 8
    %279 = vbcast.lane.b32.xlu0 %v273, %s278
    %v280 = vpop.permute.xlu0 %279
    %v281 = vmul.f32 %v35, %v265
    %v282 = vmul.f32 %v36, %v269
    %v283 = vmul.f32 %v37, %v276
    %v284 = vmul.f32 %v38, %v280
    %285 = vst.msk [vmem:[#allocation5] sm:$0xff] %vm39, %v281
    %286 = vst.msk [vmem:[#allocation5 + $0x8] sm:$0xff] %vm39, %v282
    %287 = vst.msk [vmem:[#allocation5 + $0x10] sm:$0xff] %vm39, %v283
    %288 = vst.msk [vmem:[#allocation5 + $0x18] sm:$0xff] %vm39, %v284
    // Predicated region
    $region26: #{tpu_custom_call.1} parent=1 // pred_check
      _
    $region27: #{tpu_custom_call.1} parent=1 // pred_check_branch
      %290 = sbr.rel (0) target = $region29
    $region28: #{tpu_custom_call.1} parent=1 // pred_region
      %s292 = ssub.s32 512, 512
      %293 = vsyncadd [#allocation4], %s292
      %s294 = sshll.u32 [#allocation5], 4
      %s295 = int_to_ptr.vmem [resolvable:$true] %s294
      %300 = dma.vmem_to_hbm [thread:$0]  %s295, 512, %s5, [#allocation4], 128, 128, 8
    $region29: #{tpu_custom_call.1} parent=1 // pred_fallthru
      _
    // Predicated region
    $region30: #{tpu_custom_call.1} parent=1 // pred_check
      _
    $region31: #{tpu_custom_call.1} parent=1 // pred_check_branch
      %302 = sbr.rel (0) target = $region33
    $region32: #{tpu_custom_call.1} parent=1 // pred_region
      %303 = dma.done [#allocation4], 512
    $region33: #{tpu_custom_call.1} parent=1 // pred_fallthru
      _
    %304 = vsyncpa [#allocation3], 1
    %305 = vsyncpa [#allocation4], 1

</llo_original>
